<compile_context>
chip_gen: v6e
topology: v6e:2x2x1
jax: 0.10.0
libtpu: 0.0.40
codegen_flags: <defaults>
</compile_context>

<pallas_src>
import functools

import jax
import jax.numpy as jnp
from jax.experimental import pallas as pl
from jax.experimental.pallas import tpu as pltpu


# ----------------------------- Pallas kernel --------------------------------
def _dlif_block_kernel(state0_ref, g_ref, w_ref, out_ref,
                       state_sc, isyn_g_sc, isyn_s_sc, *,
                       n_groups, out_channels, time_block, batch_tile, c_in,
                       dt, tau_syn_inv, tau_mem_inv, v_leak, v_th, v_reset,
                       loop_unroll):
    """One grid step == one (batch tile, time block). grid = (B//Bt, T//TB).

    Recurrent state [sd_0..sd_{G-1} | sd_sum | v] lives in VMEM scratch across
    time blocks; inside a block it is carried in fori_loop vreg carries.
    """
    O = out_channels
    G = n_groups
    TB = time_block
    Bt = batch_tile
    GO = G * O

    # Re-initialize the carried state at the first time block of each batch tile.
    @pl.when(pl.program_id(1) == 0)
    def _():
        state_sc[...] = state0_ref[...]

    # --- Hoisted MXU work: I_syn depends only on the inputs, so compute it for
    # the whole time block as one well-shaped matmul (TB*Bt, c_in) @ (c_in, (G+1)*O).
    # The trailing O columns of the fused weight vertically stack all group
    # weights, so the MXU emits sum_g I_syn_g directly -> no per-step
    # cross-lane group reduction inside the recurrence.
    g_flat = g_ref[...].reshape(TB * Bt, c_in)
    i_all = jnp.dot(g_flat, w_ref[...], preferred_element_type=jnp.float32)
    i_all = i_all.reshape(TB, Bt, (G + 1) * O)
    isyn_g_sc[...] = i_all[:, :, :GO]     # per-group synaptic drive
    isyn_s_sc[...] = i_all[:, :, GO:]     # summed synaptic drive

    a_syn = dt * tau_syn_inv
    a_mem = dt * tau_mem_inv

    # Block-entry state: read the scratch once.
    sd_g0 = state_sc[:, :GO]
    sd_s0 = state_sc[:, GO:GO + O]
    v0 = state_sc[:, GO + O:]

    # --- Pure-VPU serial recurrence over the TB in-block timesteps.
    def step(t, carry):
        sd_g, sd_s, v = carry
        # DENDCell: sd' = sd + dt * tau_syn_inv * (I_syn - sd)
        sd_g_new = sd_g + a_syn * (isyn_g_sc[t] - sd_g)
        sd_s_new = sd_s + a_syn * (isyn_s_sc[t] - sd_s)   # carried group sum
        # LIFCell: v' = v + dt * tau_mem_inv * ((v_leak - v) + x0); hard reset.
        v_new = v + a_mem * ((v_leak - v) + sd_s_new)
        # TODO(synk): strict '>' at threshold; real norse Heaviside may use '>='.
        z = (v_new > v_th).astype(jnp.float32)
        v_new = jnp.where(z > 0, v_reset, v_new)
        # Lane-dense packed output slab: [z | sd_0 .. sd_{G-1} | v].
        out_ref[t, :, :O] = z
        out_ref[t, :, O:O + GO] = sd_g_new
        out_ref[t, :, O + GO:] = v_new
        return sd_g_new, sd_s_new, v_new

    sd_g, sd_s, v = jax.lax.fori_loop(0, TB, step, (sd_g0, sd_s0, v0),
                                      unroll=loop_unroll)

    # Block-exit state writeback (once per block).
    state_sc[:, :GO] = sd_g
    state_sc[:, GO:GO + O] = sd_s
    state_sc[:, GO + O:] = v


# ----------------------------- Python wrapper --------------------------------
def dlif_forward_sequence(group_seqs, weights_t, sd, sh_v, *, dt=1e-3,
                          tau_syn_inv=200.0, tau_mem_inv=100.0,
                          v_leak=0.0, v_th=1.0, v_reset=0.0,
                          time_block=128, batch_tile=None):
    """Run T timesteps of DLIFWrapper inside one pallas_call.

    group_seqs: list of (T, B, in_c_i) activations per group.
    weights_t:  list of (in_c_i, O) weights (torch Linear weight transposed).
    sd:         list of (B, O) initial dendritic states.
    sh_v:       (B, O) initial membrane voltage.
    Returns (z_seq (T,B,O), sd_seq [list of (T,B,O)], v_seq (T,B,O)).
    """
    n_groups = len(group_seqs)
    T, B, _ = group_seqs[0].shape
    O = int(sd[0].shape[-1])
    in_cs = [int(g.shape[-1]) for g in group_seqs]
    c_in = sum(in_cs)
    slab = (n_groups + 2) * O

    Bt = B if batch_tile is None else int(batch_tile)
    assert B % Bt == 0, "batch must be divisible by batch_tile"
    TB = max(1, min(int(time_block), int(T)))
    T_pad = -(-int(T) // TB) * TB
    n_tb = T_pad // TB
    # Unrolling the short in-block loop gives the LLO scheduler visibility.
    loop_unroll = True if TB <= 64 else (8 if TB % 8 == 0 else 1)

    # Pack activations into one lane-dense slab (T, B, c_in); pad T to TB mult.
    g_cat = jnp.concatenate(group_seqs, axis=-1).astype(jnp.float32)
    if T_pad != T:
        g_cat = jnp.pad(g_cat, ((0, T_pad - T), (0, 0), (0, 0)))
    # NOTE: inputs/weights kept f32 for bit-tight parity with the f32 reference;
    # casting g_cat/w_fused to bf16 would halve the streamed input DMA bytes.

    # Packed initial state: [sd_0 .. sd_{G-1} | sum_g sd_g | v].
    sd_sum0 = sd[0]
    for s in sd[1:]:
        sd_sum0 = sd_sum0 + s
    state0 = jnp.concatenate(list(sd) + [sd_sum0, sh_v],
                             axis=-1).astype(jnp.float32)

    # Fused weight (c_in, (G+1)*O): block-diagonal per-group weights plus a
    # trailing column block that vertically stacks all group weights so the
    # matmul also emits sum_g I_syn_g (valid: shared tau_syn_inv across groups).
    w_fused = jnp.zeros((c_in, (n_groups + 1) * O), jnp.float32)
    off = 0
    for gi, (w, ci) in enumerate(zip(weights_t, in_cs)):
        w32 = w.astype(jnp.float32)
        w_fused = w_fused.at[off:off + ci, gi * O:(gi + 1) * O].set(w32)
        w_fused = w_fused.at[off:off + ci, n_groups * O:].set(w32)
        off += ci

    kernel = functools.partial(
        _dlif_block_kernel, n_groups=n_groups, out_channels=O,
        time_block=TB, batch_tile=Bt, c_in=c_in, dt=dt,
        tau_syn_inv=tau_syn_inv, tau_mem_inv=tau_mem_inv,
        v_leak=v_leak, v_th=v_th, v_reset=v_reset, loop_unroll=loop_unroll)

    # Advisory cost: useful matmul flops (group blocks + summed-drive block).
    useful_flops = 2 * T_pad * B * (sum(ci * O for ci in in_cs) + c_in * O)
    cost = pl.CostEstimate(
        flops=int(useful_flops), transcendentals=0,
        bytes_accessed=int(4 * (g_cat.size + w_fused.size + state0.size
                                + T_pad * B * slab)))

    # Explicit VMEM budget: double-buffered streamed blocks + I_syn staging
    # + weights + state (headroom x2, clamped to be safe on v7x's 64 MiB).
    vmem_est = 4 * (2 * TB * Bt * c_in + 2 * TB * Bt * slab
                    + TB * Bt * (n_groups + 1) * O
                    + c_in * (n_groups + 1) * O + 2 * Bt * slab)
    vmem_limit = int(min(max(2 * vmem_est, 16 * 1024 * 1024), 48 * 1024 * 1024))

    out = pl.pallas_call(
        kernel,
        grid=(B // Bt, n_tb),
        in_specs=[
            # VMEM-resident per batch tile (constant over the time-block axis).
            pl.BlockSpec((Bt, slab), lambda b, t: (b, 0)),                   # state0
            # Streamed per time block (auto double-buffered by the pipeline).
            pl.BlockSpec((TB, Bt, c_in), lambda b, t: (t, b, 0)),            # g_cat
            pl.BlockSpec((c_in, (n_groups + 1) * O), lambda b, t: (0, 0)),   # w_fused
        ],
        out_specs=pl.BlockSpec((TB, Bt, slab), lambda b, t: (t, b, 0)),
        out_shape=jax.ShapeDtypeStruct((T_pad, B, slab), jnp.float32),
        scratch_shapes=[
            pltpu.VMEM((Bt, slab), jnp.float32),                 # carried state
            pltpu.VMEM((TB, Bt, n_groups * O), jnp.float32),     # per-group I_syn
            pltpu.VMEM((TB, Bt, O), jnp.float32),                # summed I_syn
        ],
        compiler_params=pltpu.CompilerParams(
            # Batch tiles are independent -> 'parallel' (sharded across the two
            # TensorCores on v7x); the time-block axis is a recurrence.
            dimension_semantics=("parallel", "arbitrary"),
            vmem_limit_bytes=vmem_limit),
        cost_estimate=cost,
    )(state0, g_cat, w_fused)

    out = out[:T]
    z_seq = out[..., :O]
    sd_seq = [out[..., (gi + 1) * O:(gi + 2) * O] for gi in range(n_groups)]
    v_seq = out[..., (n_groups + 1) * O:]
    return z_seq, sd_seq, v_seq


def dlif_forward(groups, weights_t, sd, sh_v, **params):
    """Single-step forward matching DLIFWrapper.forward(groups, sd, sh)."""
    z_seq, sd_seq, v_seq = dlif_forward_sequence(
        [g[None] for g in groups], weights_t, sd, sh_v, **params)
    return z_seq[0], [s[0] for s in sd_seq], v_seq[0]


# ----------------------------- pure-JAX references --------------------------
def dlif_step_reference(groups, weights_t, sd, sh_v, *, dt=1e-3,
                        tau_syn_inv=200.0, tau_mem_inv=100.0,
                        v_leak=0.0, v_th=1.0, v_reset=0.0):
    sd_o, acc = [], None
    for g, w, s in zip(groups, weights_t, sd):
        i_syn = g @ w
        s_new = s + dt * tau_syn_inv * (i_syn - s)
        sd_o.append(s_new)
        acc = s_new if acc is None else acc + s_new
    v_new = sh_v + dt * tau_mem_inv * ((v_leak - sh_v) + acc)
    z = (v_new > v_th).astype(jnp.float32)
    v_new = jnp.where(z > 0, v_reset, v_new)
    return z, sd_o, v_new


def dlif_sequence_reference(group_seqs, weights_t, sd, sh_v, **params):
    def step(carry, g_t):
        sd_cur, v_cur = carry
        z, sd_new, v_new = dlif_step_reference(
            list(g_t), weights_t, list(sd_cur), v_cur, **params)
        return (tuple(sd_new), v_new), (z, tuple(sd_new), v_new)

    (_, _), (zs, sds, vs) = jax.lax.scan(
        step, (tuple(sd), sh_v), tuple(group_seqs))
    return zs, list(sds), vs


if __name__ == "__main__":
    key = jax.random.PRNGKey(0)
    k_g0, k_g1, k_w0, k_w1, k_sd0, k_sd1, k_sh = jax.random.split(key, 7)

    B = 8                       # batch
    in_channels = [32, 16]      # per-group input features
    O = 32                      # out_channels
    T = 128                     # timesteps fused into one kernel call
    dt = 1e-3

    g_seq0 = jax.random.normal(k_g0, (T, B, in_channels[0]), jnp.float32)
    g_seq1 = jax.random.normal(k_g1, (T, B, in_channels[1]), jnp.float32)

    # torch.nn.Linear default init U(-1/sqrt(fan_in), 1/sqrt(fan_in)),
    # stored [out, in]; pass transposed [in, out].
    def init_w(k, fan_in, fan_out):
        bound = 1.0 / jnp.sqrt(jnp.float32(fan_in))
        w_oi = jax.random.uniform(k, (fan_out, fan_in), jnp.float32,
                                  minval=-bound, maxval=bound)
        return w_oi.T

    w0 = init_w(k_w0, in_channels[0], O)
    w1 = init_w(k_w1, in_channels[1], O)

    sd0 = 0.1 * jax.random.normal(k_sd0, (B, O), jnp.float32)
    sd1 = 0.1 * jax.random.normal(k_sd1, (B, O), jnp.float32)
    sh_v = jax.random.uniform(k_sh, (B, O), jnp.float32, minval=0.0, maxval=1.2)

    # --- single-step check (exactly the module's forward semantics) ---
    z, sd_o, sh_o = dlif_forward([g_seq0[0], g_seq1[0]], [w0, w1],
                                 [sd0, sd1], sh_v, dt=dt)
    jax.block_until_ready((z, sd_o, sh_o))
    z_r, sd_r, sh_r = dlif_step_reference([g_seq0[0], g_seq1[0]], [w0, w1],
                                          [sd0, sd1], sh_v, dt=dt)
    assert jnp.allclose(z, z_r, atol=1e-5)
    assert jnp.allclose(sd_o[0], sd_r[0], atol=1e-5)
    assert jnp.allclose(sd_o[1], sd_r[1], atol=1e-5)
    assert jnp.allclose(sh_o, sh_r, atol=1e-5)

    # --- multi-step check: time-blocked recurrence inside one kernel call ---
    z_seq, sd_seq, v_seq = dlif_forward_sequence(
        [g_seq0, g_seq1], [w0, w1], [sd0, sd1], sh_v, dt=dt,
        time_block=32)                 # grid = (1, 4); TB*B = 256 fills MXU M
    jax.block_until_ready((z_seq, sd_seq, v_seq))
    z_rs, sd_rs, v_rs = dlif_sequence_reference(
        [g_seq0, g_seq1], [w0, w1], [sd0, sd1], sh_v, dt=dt)
    assert jnp.allclose(z_seq, z_rs, atol=1e-4)
    assert jnp.allclose(sd_seq[0], sd_rs[0], atol=1e-4)
    assert jnp.allclose(sd_seq[1], sd_rs[1], atol=1e-4)
    assert jnp.allclose(v_seq, v_rs, atol=1e-4)

    print("KERNEL_OK")
</pallas_src>

<mosaic_0001>
module attributes {stable_mosaic.version = 11 : i64} {
  func.func @_dlif_block_kernel(%arg0: i32, %arg1: i32, %arg2: memref<8x128xf32, #tpu.memory_space<vmem>>, %arg3: memref<1x8x48xf32, #tpu.memory_space<vmem>>, %arg4: memref<48x96xf32, #tpu.memory_space<vmem>>, %arg5: memref<1x8x128xf32, #tpu.memory_space<vmem>>, %arg6: memref<8x128xf32, #tpu.memory_space<vmem>>, %arg7: memref<1x8x64xf32, #tpu.memory_space<vmem>>, %arg8: memref<1x8x32xf32, #tpu.memory_space<vmem>>) attributes {dimension_semantics = [#tpu.dimension_semantics<parallel>, #tpu.dimension_semantics<arbitrary>], iteration_bounds = array<i64: 1, 1>, scalar_prefetch = 0 : i64, scratch_operands = 3 : i64, tpu.core_type = #tpu.core_type<tc>, window_params = [{transform_indices = @transform_0, window_bounds = array<i64: 8, 128>}, {transform_indices = @transform_1, window_bounds = array<i64: 1, 8, 48>}, {pipeline_mode = #tpu.pipeline_mode<synchronous>, transform_indices = @transform_2, window_bounds = array<i64: 48, 96>}, {transform_indices = @transform_3, window_bounds = array<i64: 1, 8, 128>}]} {
    %c0_i32 = arith.constant 0 : i32
    %0 = arith.cmpi eq, %arg1, %c0_i32 : i32
    %1 = arith.extui %0 : i1 to i32
    %c0_i32_0 = arith.constant 0 : i32
    %2 = arith.cmpi ne, %1, %c0_i32_0 : i32
    scf.if %2 {
      %c0_38 = arith.constant 0 : index
      %c0_39 = arith.constant 0 : index
      %58 = vector.load %arg2[%c0_38, %c0_39] : memref<8x128xf32, #tpu.memory_space<vmem>>, vector<8x128xf32>
      %c0_40 = arith.constant 0 : index
      %c0_41 = arith.constant 0 : index
      %59 = vector.load %arg6[%c0_40, %c0_41] : memref<8x128xf32, #tpu.memory_space<vmem>>, vector<8x128xf32>
      tpu.vector_store %arg6[%c0_40, %c0_41], %58 {strides = array<i32>} : memref<8x128xf32, #tpu.memory_space<vmem>>, vector<8x128xf32>,
    } else {
    }
    %c0 = arith.constant 0 : index
    %c0_1 = arith.constant 0 : index
    %c0_2 = arith.constant 0 : index
    %3 = vector.load %arg3[%c0, %c0_1, %c0_2] : memref<1x8x48xf32, #tpu.memory_space<vmem>>, vector<1x8x48xf32>
    %4 = vector.shape_cast %3 : vector<1x8x48xf32> to vector<8x48xf32>
    %c0_3 = arith.constant 0 : index
    %c0_4 = arith.constant 0 : index
    %5 = vector.load %arg4[%c0_3, %c0_4] : memref<48x96xf32, #tpu.memory_space<vmem>>, vector<48x96xf32>
    %cst = arith.constant dense<0.000000e+00> : vector<8x96xf32>
    %6 = tpu.matmul %4, %5, %cst {dimension_numbers = #tpu.dot_dimension_numbers<[1], [0], [0], [1], [0, 0, 1, 1], [], []>} : vector<8x48xf32>, vector<48x96xf32>, vector<8x96xf32> -> vector<8x96xf32>
    %7 = vector.shape_cast %6 : vector<8x96xf32> to vector<1x8x96xf32>
    %8 = vector.extract_strided_slice %7 {offsets = [0, 0, 0], sizes = [1, 8, 64], strides = [1, 1, 1]} : vector<1x8x96xf32> to vector<1x8x64xf32>
    %c0_5 = arith.constant 0 : index
    %c0_6 = arith.constant 0 : index
    %c0_7 = arith.constant 0 : index
    %9 = vector.load %arg7[%c0_5, %c0_6, %c0_7] : memref<1x8x64xf32, #tpu.memory_space<vmem>>, vector<1x8x64xf32>
    tpu.vector_store %arg7[%c0_5, %c0_6, %c0_7], %8 {strides = array<i32>} : memref<1x8x64xf32, #tpu.memory_space<vmem>>, vector<1x8x64xf32>,
    %10 = vector.extract_strided_slice %7 {offsets = [0, 0, 64], sizes = [1, 8, 32], strides = [1, 1, 1]} : vector<1x8x96xf32> to vector<1x8x32xf32>
    %c0_8 = arith.constant 0 : index
    %c0_9 = arith.constant 0 : index
    %c0_10 = arith.constant 0 : index
    %11 = vector.load %arg8[%c0_8, %c0_9, %c0_10] : memref<1x8x32xf32, #tpu.memory_space<vmem>>, vector<1x8x32xf32>
    tpu.vector_store %arg8[%c0_8, %c0_9, %c0_10], %10 {strides = array<i32>} : memref<1x8x32xf32, #tpu.memory_space<vmem>>, vector<1x8x32xf32>,
    %c0_11 = arith.constant 0 : index
    %c0_12 = arith.constant 0 : index
    %12 = vector.load %arg6[%c0_11, %c0_12] : memref<8x128xf32, #tpu.memory_space<vmem>>, vector<8x64xf32>
    %c0_13 = arith.constant 0 : index
    %c64 = arith.constant 64 : index
    %13 = vector.load %arg6[%c0_13, %c64] : memref<8x128xf32, #tpu.memory_space<vmem>>, vector<8x32xf32>
    %c0_14 = arith.constant 0 : index
    %c96 = arith.constant 96 : index
    %14 = vector.load %arg6[%c0_14, %c96] : memref<8x128xf32, #tpu.memory_space<vmem>>, vector<8x32xf32>
    %c0_i32_15 = arith.constant 0 : i32
    %15 = arith.index_cast %c0_i32_15 : i32 to index
    %c0_16 = arith.constant 0 : index
    %c0_17 = arith.constant 0 : index
    %16 = vector.load %arg7[%15, %c0_16, %c0_17] : memref<1x8x64xf32, #tpu.memory_space<vmem>>, vector<1x8x64xf32>
    %17 = vector.shape_cast %16 : vector<1x8x64xf32> to vector<8x64xf32>
    %18 = arith.subf %17, %12 : vector<8x64xf32>
    %cst_18 = arith.constant 2.000000e-01 : f32
    %19 = vector.broadcast %cst_18 : f32 to vector<8x64xf32>
    %20 = arith.mulf %19, %18 : vector<8x64xf32>
    %21 = arith.addf %12, %20 : vector<8x64xf32>
    %22 = arith.index_cast %c0_i32_15 : i32 to index
    %c0_19 = arith.constant 0 : index
    %c0_20 = arith.constant 0 : index
    %23 = vector.load %arg8[%22, %c0_19, %c0_20] : memref<1x8x32xf32, #tpu.memory_space<vmem>>, vector<1x8x32xf32>
    %24 = vector.shape_cast %23 : vector<1x8x32xf32> to vector<8x32xf32>
    %25 = arith.subf %24, %13 : vector<8x32xf32>
    %cst_21 = arith.constant 2.000000e-01 : f32
    %26 = vector.broadcast %cst_21 : f32 to vector<8x32xf32>
    %27 = arith.mulf %26, %25 : vector<8x32xf32>
    %28 = arith.addf %13, %27 : vector<8x32xf32>
    %cst_22 = arith.constant 0.000000e+00 : f32
    %29 = vector.broadcast %cst_22 : f32 to vector<8x32xf32>
    %30 = arith.subf %29, %14 : vector<8x32xf32>
    %31 = arith.addf %30, %28 : vector<8x32xf32>
    %cst_23 = arith.constant 1.000000e-01 : f32
    %32 = vector.broadcast %cst_23 : f32 to vector<8x32xf32>
    %33 = arith.mulf %32, %31 : vector<8x32xf32>
    %34 = arith.addf %14, %33 : vector<8x32xf32>
    %cst_24 = arith.constant 1.000000e+00 : f32
    %35 = vector.broadcast %cst_24 : f32 to vector<8x32xf32>
    %36 = arith.cmpf ogt, %34, %35 : vector<8x32xf32>
    %37 = arith.extui %36 : vector<8x32xi1> to vector<8x32xi32>
    %38 = arith.sitofp %37 : vector<8x32xi32> to vector<8x32xf32>
    %cst_25 = arith.constant 0.000000e+00 : f32
    %39 = vector.broadcast %cst_25 : f32 to vector<8x32xf32>
    %40 = arith.cmpf ogt, %38, %39 : vector<8x32xf32>
    %cst_26 = arith.constant 0.000000e+00 : f32
    %41 = vector.broadcast %cst_26 : f32 to vector<8x32xf32>
    %42 = arith.select %40, %41, %34 : vector<8x32xi1>, vector<8x32xf32>
    %43 = arith.index_cast %c0_i32_15 : i32 to index
    %c0_27 = arith.constant 0 : index
    %c0_28 = arith.constant 0 : index
    %44 = vector.load %arg5[%43, %c0_27, %c0_28] : memref<1x8x128xf32, #tpu.memory_space<vmem>>, vector<1x8x32xf32>
    %45 = vector.shape_cast %44 : vector<1x8x32xf32> to vector<8x32xf32>
    %46 = vector.shape_cast %38 : vector<8x32xf32> to vector<1x8x32xf32>
    tpu.vector_store %arg5[%43, %c0_27, %c0_28], %46 {strides = array<i32>} : memref<1x8x128xf32, #tpu.memory_space<vmem>>, vector<1x8x32xf32>,
    %47 = arith.index_cast %c0_i32_15 : i32 to index
    %c0_29 = arith.constant 0 : index
    %c32 = arith.constant 32 : index
    %48 = vector.load %arg5[%47, %c0_29, %c32] : memref<1x8x128xf32, #tpu.memory_space<vmem>>, vector<1x8x64xf32>
    %49 = vector.shape_cast %48 : vector<1x8x64xf32> to vector<8x64xf32>
    %50 = vector.shape_cast %21 : vector<8x64xf32> to vector<1x8x64xf32>
    tpu.vector_store %arg5[%47, %c0_29, %c32], %50 {strides = array<i32>} : memref<1x8x128xf32, #tpu.memory_space<vmem>>, vector<1x8x64xf32>,
    %51 = arith.index_cast %c0_i32_15 : i32 to index
    %c0_30 = arith.constant 0 : index
    %c96_31 = arith.constant 96 : index
    %52 = vector.load %arg5[%51, %c0_30, %c96_31] : memref<1x8x128xf32, #tpu.memory_space<vmem>>, vector<1x8x32xf32>
    %53 = vector.shape_cast %52 : vector<1x8x32xf32> to vector<8x32xf32>
    %54 = vector.shape_cast %42 : vector<8x32xf32> to vector<1x8x32xf32>
    tpu.vector_store %arg5[%51, %c0_30, %c96_31], %54 {strides = array<i32>} : memref<1x8x128xf32, #tpu.memory_space<vmem>>, vector<1x8x32xf32>,
    %c1_i32 = arith.constant 1 : i32
    %c0_32 = arith.constant 0 : index
    %c0_33 = arith.constant 0 : index
    %55 = vector.load %arg6[%c0_32, %c0_33] : memref<8x128xf32, #tpu.memory_space<vmem>>, vector<8x64xf32>
    tpu.vector_store %arg6[%c0_32, %c0_33], %21 {strides = array<i32>} : memref<8x128xf32, #tpu.memory_space<vmem>>, vector<8x64xf32>,
    %c0_34 = arith.constant 0 : index
    %c64_35 = arith.constant 64 : index
    %56 = vector.load %arg6[%c0_34, %c64_35] : memref<8x128xf32, #tpu.memory_space<vmem>>, vector<8x32xf32>
    tpu.vector_store %arg6[%c0_34, %c64_35], %28 {strides = array<i32>} : memref<8x128xf32, #tpu.memory_space<vmem>>, vector<8x32xf32>,
    %c0_36 = arith.constant 0 : index
    %c96_37 = arith.constant 96 : index
    %57 = vector.load %arg6[%c0_36, %c96_37] : memref<8x128xf32, #tpu.memory_space<vmem>>, vector<8x32xf32>
    tpu.vector_store %arg6[%c0_36, %c96_37], %42 {strides = array<i32>} : memref<8x128xf32, #tpu.memory_space<vmem>>, vector<8x32xf32>,
    return
  }
  func.func @transform_0(%arg0: i32, %arg1: i32) -> (i32, i32) {
    %c0_i32 = arith.constant 0 : i32
    %c0_i32_0 = arith.constant 0 : i32
    return %arg0, %c0_i32 : i32, i32
  }
  func.func @transform_1(%arg0: i32, %arg1: i32) -> (i32, i32, i32) {
    %c0_i32 = arith.constant 0 : i32
    %c0_i32_0 = arith.constant 0 : i32
    return %arg1, %arg0, %c0_i32 : i32, i32, i32
  }
  func.func @transform_2(%arg0: i32, %arg1: i32) -> (i32, i32) {
    %c0_i32 = arith.constant 0 : i32
    %c0_i32_0 = arith.constant 0 : i32
    %c0_i32_1 = arith.constant 0 : i32
    return %c0_i32, %c0_i32_0 : i32, i32
  }
  func.func @transform_3(%arg0: i32, %arg1: i32) -> (i32, i32, i32) {
    %c0_i32 = arith.constant 0 : i32
    %c0_i32_0 = arith.constant 0 : i32
    return %arg1, %arg0, %c0_i32 : i32, i32, i32
  }
}

</mosaic_0001>

<llo_original>
// kernel: tpu_custom_call.1
$region0: #{tpu_custom_call.1}
  #allocation0 [shape = 'u32[]', space=smem, size = 0x4, offset = 0x4, fixed_abs, tag = 'smem constant byte address 0x4 - core index']
  #allocation1 [shape = 'u32[144,128]{1,0:T(1,128)}', space=vmem, size = 0x12000, scoped, tag = 'internal scratch']
  #allocation2 [shape = 'f32[8,128]{1,0:T(8,128)}', space=vmem, size = 0x1000, scoped, tag = 'scratch operand']
  #allocation3 [shape = 'f32[1,8,64]{2,1,0:T(8,128)}', space=vmem, size = 0x1000, scoped, tag = 'scratch operand']
  #allocation4 [shape = 'f32[1,8,32]{2,1,0:T(8,128)}', space=vmem, size = 0x1000, scoped, tag = 'scratch operand']
  %s0 = inlined_call_operand.hbm [shape: f32[8,128], index: 0, kind: input, shape index: {}]
  %s1 = inlined_call_operand.hbm [shape: f32[1,8,48], index: 1, kind: input, shape index: {}]
  %s2 = inlined_call_operand.hbm [shape: f32[48,96], index: 2, kind: input, shape index: {}]
  %s3 = inlined_call_operand.hbm [shape: f32[1,8,128], index: 3, kind: output, shape index: {}]
  %s4 = sld [smem:[#allocation0]]
  $region38: #{tpu_custom_call.1} parent=0
    _
  %s6 = ssub.s32 1, %s4
  %s7 = scalar_select 0, %s6, %s4
  $region1: #{tpu_custom_call.1} parent=0
    #allocation5 [shape = 'u8[4096]{0}', space=vmem, size = 0x1000, scoped, tag = 'input window, operand 0, single buffered']
    #allocation6 [shape = 's32[1]{0}', space=sflag, size = 0x4, scoped, tag = 'scoped memory for tpu_custom_call.1']
    #allocation7 [shape = 's32[1]{0}', space=sflag, size = 0x4, scoped, tag = 'scoped memory for tpu_custom_call.1']
    #allocation8 [shape = 'u8[4096]{0}', space=vmem, size = 0x1000, scoped, tag = 'input window, operand 1, single buffered']
    #allocation9 [shape = 's32[1]{0}', space=sflag, size = 0x4, scoped, tag = 'scoped memory for tpu_custom_call.1']
    #allocation10 [shape = 'u8[24576]{0}', space=vmem, size = 0x6000, scoped, tag = 'input window, operand 2, single buffered']
    #allocation11 [shape = 'u8[4096]{0}', space=vmem, size = 0x1000, scoped, tag = 'output window, operand 0, single buffered']
    %8 = vsyncpa [#allocation6], 0
    %9 = vsyncpa [#allocation9], 0
    %10 = vsyncpa [#allocation7], 0
    // Predicated region
    $region2: #{tpu_custom_call.1} parent=1 // pred_check
      _
    $region3: #{tpu_custom_call.1} parent=1 // pred_check_branch
      %12 = sbr.rel (0) target = $region5
    $region4: #{tpu_custom_call.1} parent=1 // pred_region
      %s14 = ssub.s32 128, 128
      %15 = vsyncadd [#allocation6], %s14
      %s17 = sshll.u32 [#allocation5], 4
      %s18 = int_to_ptr.vmem [resolvable:$true] %s17
      %20 = dma.hbm_to_vmem [thread:$0]  %s0, 128, %s18, [#allocation6]
    $region5: #{tpu_custom_call.1} parent=1 // pred_fallthru
      _
    // Predicated region
    $region6: #{tpu_custom_call.1} parent=1 // pred_check
      _
    $region7: #{tpu_custom_call.1} parent=1 // pred_check_branch
      %22 = sbr.rel (0) target = $region9
    $region8: #{tpu_custom_call.1} parent=1 // pred_region
      %s24 = ssub.s32 128, 128
      %25 = vsyncadd [#allocation9], %s24
      %s27 = sshll.u32 [#allocation8], 4
      %s28 = int_to_ptr.vmem [resolvable:$true] %s27
      %30 = dma.hbm_to_vmem [thread:$0]  %s1, 128, %s28, [#allocation9]
    $region9: #{tpu_custom_call.1} parent=1 // pred_fallthru
      _
    // Predicated region
    $region10: #{tpu_custom_call.1} parent=1 // pred_check
      _
    $region11: #{tpu_custom_call.1} parent=1 // pred_check_branch
      %32 = sbr.rel (0) target = $region13
    $region12: #{tpu_custom_call.1} parent=1 // pred_region
      %s34 = ssub.s32 768, 768
      %35 = vsyncadd [#allocation9], %s34
      %s36 = sshll.u32 [#allocation10], 4
      %s37 = int_to_ptr.vmem [resolvable:$true] %s36
      %42 = dma.hbm_to_vmem [thread:$0]  %s2, 768, %s37, [#allocation9], 128, 128, 8
    $region13: #{tpu_custom_call.1} parent=1 // pred_fallthru
      _
    // Predicated region
    $region14: #{tpu_custom_call.1} parent=1 // pred_check
      _
    $region15: #{tpu_custom_call.1} parent=1 // pred_check_branch
      %44 = sbr.rel (0) target = $region17
    $region16: #{tpu_custom_call.1} parent=1 // pred_region
      %45 = dma.done [#allocation6], 128
    $region17: #{tpu_custom_call.1} parent=1 // pred_fallthru
      _
    // Predicated region
    $region18: #{tpu_custom_call.1} parent=1 // pred_check
      _
    $region19: #{tpu_custom_call.1} parent=1 // pred_check_branch
      %47 = sbr.rel (0) target = $region21
    $region20: #{tpu_custom_call.1} parent=1 // pred_region
      %48 = dma.done [#allocation9], 128
    $region21: #{tpu_custom_call.1} parent=1 // pred_fallthru
      _
    // Predicated region
    $region22: #{tpu_custom_call.1} parent=1 // pred_check
      _
    $region23: #{tpu_custom_call.1} parent=1 // pred_check_branch
      %50 = sbr.rel (0) target = $region25
    $region24: #{tpu_custom_call.1} parent=1 // pred_region
      %51 = dma.done [#allocation9], 768
    $region25: #{tpu_custom_call.1} parent=1 // pred_fallthru
      _
    %p52 = scmp.eq.s32.totalorder 0, 0
    // Predicated region
    $region26: #{tpu_custom_call.1} parent=1 // pred_check
      %p53 = pneg %p52
    $region27: #{tpu_custom_call.1} parent=1 // pred_check_branch
      %55 = sbr.rel (%p53) target = $region29
    $region28: #{tpu_custom_call.1} parent=1 // pred_region
      %v56 = vld [vmem:[#allocation5] sm:$0xff]
      %57 = vst [vmem:[#allocation2] sm:$0xff] %v56
    $region29: #{tpu_custom_call.1} parent=1 // pred_fallthru
      _
    %v58 = vld [vmem:[#allocation8] sm:$0xff]
    %v59 = vld [vmem:[#allocation10] sm:$0xff]
    %v60 = vld [vmem:[#allocation10 + $0x8] sm:$0xff]
    %v61 = vld [vmem:[#allocation10 + $0x10] sm:$0xff]
    %v62 = vld [vmem:[#allocation10 + $0x18] sm:$0xff]
    %v63 = vld [vmem:[#allocation10 + $0x20] sm:$0xff]
    %v64 = vld [vmem:[#allocation10 + $0x28] sm:$0xff]
    %vm65 = vcmask 392192
    %v67 = vsel %vm65, %v58, 0
    %69 = vmatprep.subr.mxu0 0.0
    %70 = vmatpush1.msra.mxu0 0.0
    %71 = vmatprep.subr.mxu0 0.0
    %72 = vmatpush1.msra.mxu0 0.0
    %73 = vmatprep.subr.mxu0 0.0
    %74 = vmatpush1.msra.mxu0 0.0
    %75 = vmatprep.subr.mxu0 0.0
    %76 = vmatpush1.msra.mxu0 0.0
    %77 = vmatprep.subr.mxu0 0.0
    %78 = vmatpush1.msra.mxu0 0.0
    %79 = vmatprep.subr.mxu0 0.0
    %80 = vmatpush1.msra.mxu0 0.0
    %81 = vmatprep.subr.mxu0 0.0
    %82 = vmatpush1.msra.mxu0 0.0
    %83 = vmatprep.subr.mxu0 0.0
    %84 = vmatpush1.msra.mxu0 0.0
    %85 = vmatprep.subr.mxu0 0.0
    %86 = vmatpush1.msra.mxu0 0.0
    %87 = vmatprep.subr.mxu0 0.0
    %88 = vmatpush1.msra.mxu0 0.0
    %89 = vmatprep.subr.mxu0 0.0
    %90 = vmatpush1.msra.mxu0 %v64
    %91 = vmatprep.subr.mxu0 0.0
    %92 = vmatpush1.msra.mxu0 %v63
    %93 = vmatprep.subr.mxu0 0.0
    %94 = vmatpush1.msra.mxu0 %v62
    %95 = vmatprep.subr.mxu0 0.0
    %96 = vmatpush1.msra.mxu0 %v61
    %97 = vmatprep.subr.mxu0 0.0
    %98 = vmatpush1.msra.mxu0 %v60
    %99 = vmatprep.subr.mxu0 0.0
    %100 = vmatpush1.msra.mxu0 %v59
    %101 = vmatprep.subr.mxu0 0.0
    %102 = vmatpush2.msra.mxu0 0.0
    %103 = vmatprep.subr.mxu0 0.0
    %104 = vmatpush2.msra.mxu0 0.0
    %105 = vmatprep.subr.mxu0 0.0
    %106 = vmatpush2.msra.mxu0 0.0
    %107 = vmatprep.subr.mxu0 0.0
    %108 = vmatpush2.msra.mxu0 0.0
    %109 = vmatprep.subr.mxu0 0.0
    %110 = vmatpush2.msra.mxu0 0.0
    %111 = vmatprep.subr.mxu0 0.0
    %112 = vmatpush2.msra.mxu0 0.0
    %113 = vmatprep.subr.mxu0 0.0
    %114 = vmatpush2.msra.mxu0 0.0
    %115 = vmatprep.subr.mxu0 0.0
    %116 = vmatpush2.msra.mxu0 0.0
    %117 = vmatprep.subr.mxu0 0.0
    %118 = vmatpush2.msra.mxu0 0.0
    %119 = vmatprep.subr.mxu0 0.0
    %120 = vmatpush2.msra.mxu0 0.0
    %121 = vmatprep.subr.mxu0 0.0
    %122 = vmatpush2.msra.mxu0 0.0
    %123 = vmatprep.subr.mxu0 0.0
    %124 = vmatpush2.msra.mxu0 0.0
    %125 = vmatprep.subr.mxu0 0.0
    %126 = vmatpush2.msra.mxu0 0.0
    %127 = vmatprep.subr.mxu0 0.0
    %128 = vmatpush2.msra.mxu0 0.0
    %129 = vmatprep.subr.mxu0 0.0
    %130 = vmatpush2.msra.mxu0 0.0
    %131 = vmatprep.subr.mxu0 0.0
    %132 = vmatpush2.msra.mxu0 0.0
    %133 = vmatprep.mubr.f32.mxu0 0.0
    %134 = vmatmul.mubr.f32.gmra.mxu0 %v67
    %v135 = vpop.f32.mrf.mxu0
    %v136 = vadd.f32 0.0, %v135
    %v137 = vpop.f32.mrf.mxu0
    %138 = vdwg.mxu0
    %vm139 = vcmask 523264
    %140 = vst.msk [vmem:[#allocation3] sm:$0xff] %vm139, %v136
    %142 = vrot.lane.b32.xlu0 %v136, 64
    %v143 = vpop.permute.xlu0 %142
    %vm145 = vcmask 261120
    %146 = vst.msk [vmem:[#allocation4] sm:$0xff] %vm145, %v143
    %v147 = vld [vmem:[#allocation2] sm:$0xff]
    %v148 = vld [vmem:[#allocation3] sm:$0xff]
    %v149 = vsub.f32 %v148, %v147
    %v150 = vmul.f32 %v149, 0.2
    %v151 = vadd.f32 %v147, %v150
    %v152 = vld [vmem:[#allocation4] sm:$0xff]
    %154 = vrot.lane.b32.xlu0 %v147, 64
    %v155 = vpop.permute.xlu0 %154
    %v157 = vsub.f32 %v152, %v155
    %v158 = vmul.f32 %v157, 0.2
    %160 = vrot.lane.b32.xlu0 %v158, 64
    %v161 = vpop.permute.xlu0 %160
    %v163 = vadd.f32 %v147, %v161
    %v164 = vsub.f32 0.0, %v147
    %166 = vrot.lane.b32.xlu0 %v163, 32
    %v167 = vpop.permute.xlu0 %166
    %v169 = vadd.f32 %v164, %v167
    %v170 = vmul.f32 %v169, 0.1
    %v171 = vadd.f32 %v147, %v170
    %vm172 = vcmp.gt.f32.partialorder %v171, 1.0
    %v173 = vsel %vm172, 1, 0
    %v174 = vcvt.s32.f32 %v173
    %vm175 = vcmp.gt.f32.partialorder %v174, 0.0
    %v176 = vsel %vm175, 0.0, %v171
    %178 = vrot.lane.b32.xlu0 %v174, 32
    %v179 = vpop.permute.xlu0 %178
    %181 = vst.msk [vmem:[#allocation11] sm:$0xff] %vm145, %v179
    %183 = vrot.lane.b32.xlu0 %v151, 32
    %v184 = vpop.permute.xlu0 %183
    %vm186 = vcmask 785664
    %187 = vst.msk [vmem:[#allocation11] sm:$0xff] %vm186, %v184
    %vm188 = vcmask 1048320
    %189 = vst.msk [vmem:[#allocation11] sm:$0xff] %vm188, %v176
    %190 = vst.msk [vmem:[#allocation2] sm:$0xff] %vm139, %v151
    %vm191 = vcmask 785920
    %192 = vst.msk [vmem:[#allocation2] sm:$0xff] %vm191, %v163
    %193 = vst.msk [vmem:[#allocation2] sm:$0xff] %vm188, %v176
    // Predicated region
    $region30: #{tpu_custom_call.1} parent=1 // pred_check
      _
    $region31: #{tpu_custom_call.1} parent=1 // pred_check_branch
      %195 = sbr.rel (0) target = $region33
    $region32: #{tpu_custom_call.1} parent=1 // pred_region
      %s197 = ssub.s32 128, 128
      %198 = vsyncadd [#allocation7], %s197
      %s200 = sshll.u32 [#allocation11], 4
      %s201 = int_to_ptr.vmem [resolvable:$true] %s200
      %203 = dma.vmem_to_hbm [thread:$0]  %s201, 128, %s3, [#allocation7]
    $region33: #{tpu_custom_call.1} parent=1 // pred_fallthru
      _
    // Predicated region
    $region34: #{tpu_custom_call.1} parent=1 // pred_check
      _
    $region35: #{tpu_custom_call.1} parent=1 // pred_check_branch
      %205 = sbr.rel (0) target = $region37
    $region36: #{tpu_custom_call.1} parent=1 // pred_region
      %206 = dma.done [#allocation7], 128
    $region37: #{tpu_custom_call.1} parent=1 // pred_fallthru
      _
    %207 = vsyncpa [#allocation6], 1
    %208 = vsyncpa [#allocation9], 1
    %209 = vsyncpa [#allocation7], 1

</llo_original>
